<compile_context>
chip_gen: v5e
topology: v5e:2x2
jax: 0.10.0
libtpu: 0.0.40
codegen_flags: <defaults>
</compile_context>

<pallas_src>
import functools

import jax
import jax.numpy as jnp
from jax import lax
from jax.experimental import pallas as pl
from jax.experimental.pallas import tpu as pltpu

VMEM_SPEC = pl.BlockSpec(memory_space=pltpu.MemorySpace.VMEM)


def _hidden_tile(d):
    """Pick a lane-aligned K/N tile for streaming the (d, d) hard_fc weights."""
    for t in (512, 256, 128):
        if d % t == 0 and d > t:
            return t
    return d


# ---------------------------------------------------------------------------
# supervised contrastive loss body (shared by both fused kernels)
# ---------------------------------------------------------------------------
def _cl_loss_body(x, ycol, yrow, temp):
    n = x.shape[0]
    # cosine similarity (f32; tiny (n, D) @ (D, n) matmul)
    inv_norm = lax.rsqrt(jnp.maximum(jnp.sum(x * x, axis=1, keepdims=True), 1e-16))
    xn = x * inv_norm
    sim_mat = lax.dot_general(
        xn, xn, (((1,), (1,)), ((), ())), preferred_element_type=jnp.float32
    )
    mask = (ycol == yrow).astype(jnp.float32)                     # same-label mask
    rows = lax.broadcasted_iota(jnp.int32, (n, n), 0)
    cols = lax.broadcasted_iota(jnp.int32, (n, n), 1)
    eye = (rows == cols).astype(jnp.float32)
    sim_exp = jnp.exp(sim_mat / temp) * (1.0 - eye)
    sim = mask * sim_exp
    no_sim_sum = jnp.sum(sim_exp - sim, axis=1, keepdims=True)    # (n, 1)
    sim_sum = sim + no_sim_sum
    loss = (1.0 - mask) + sim / sim_sum + eye
    loss = -jnp.log(loss)
    cl = jnp.sum(jnp.sum(loss, axis=1, keepdims=True), axis=0, keepdims=True) / (2.0 * n)
    # torch.isnan fallback applied to the final scalar only, like the reference.
    return jnp.where(jnp.isnan(cl), 0.0, cl)


# ---------------------------------------------------------------------------
# hard_fc ( LayerNorm( W2(relu(W1 x)) + x ) ) fused with get_clloss(T1, ., y)
# Grid streams w1 column-tiles / w2 row-tiles; f32 accumulator in VMEM.
# ---------------------------------------------------------------------------
def _hard_fc_cl_kernel(x_ref, w1_ref, b1_ref, w2_ref, b2_ref, g_ref, beta_ref,
                       ycol_ref, yrow_ref, o_ref, cl_ref, acc_ref, *, temp):
    j = pl.program_id(0)

    @pl.when(j == 0)
    def _():
        acc_ref[...] = jnp.zeros_like(acc_ref)

    x = x_ref[...]
    h = jnp.maximum(
        jnp.dot(x, w1_ref[...], preferred_element_type=jnp.float32) + b1_ref[...], 0.0
    )
    acc_ref[...] += jnp.dot(h, w2_ref[...], preferred_element_type=jnp.float32)

    @pl.when(j == pl.num_programs(0) - 1)
    def _():
        # TODO(synk): nn.Dropout(0.5) is the identity in inference mode.
        r = acc_ref[...] + b2_ref[...] + x_ref[...]
        mean = jnp.mean(r, axis=1, keepdims=True)
        var = jnp.mean((r - mean) ** 2, axis=1, keepdims=True)
        y = (r - mean) * lax.rsqrt(var + 1e-6) * g_ref[...] + beta_ref[...]
        o_ref[...] = y
        cl_ref[...] = _cl_loss_body(y, ycol_ref[...], yrow_ref[...], temp)


def hard_fc_with_cl(x, labels, p, temp):
    B, D2 = x.shape
    tk = _hidden_tile(D2)
    nk = D2 // tk
    ycol = labels.reshape(B, 1).astype(jnp.float32)
    yrow = labels.reshape(1, B).astype(jnp.float32)
    const = lambda j: (0, 0)
    out, cl = pl.pallas_call(
        functools.partial(_hard_fc_cl_kernel, temp=temp),
        out_shape=(jax.ShapeDtypeStruct((B, D2), jnp.float32),
                   jax.ShapeDtypeStruct((1, 1), jnp.float32)),
        grid_spec=pltpu.PrefetchScalarGridSpec(
            num_scalar_prefetch=0,
            grid=(nk,),
            in_specs=[
                pl.BlockSpec((B, D2), const),               # x (resident)
                pl.BlockSpec((D2, tk), lambda j: (0, j)),   # w1 column tile (streamed)
                pl.BlockSpec((1, tk), lambda j: (0, j)),    # b1 tile
                pl.BlockSpec((tk, D2), lambda j: (j, 0)),   # w2 row tile (streamed)
                pl.BlockSpec((1, D2), const),               # b2
                pl.BlockSpec((1, D2), const),               # ln gamma
                pl.BlockSpec((1, D2), const),               # ln beta
                pl.BlockSpec((B, 1), const),                # labels column
                pl.BlockSpec((1, B), const),                # labels row
            ],
            out_specs=(pl.BlockSpec((B, D2), const),
                       pl.BlockSpec((1, 1), const)),
            scratch_shapes=[pltpu.VMEM((B, D2), jnp.float32)],
        ),
        compiler_params=pltpu.CompilerParams(dimension_semantics=("arbitrary",)),
    )(x, p["w1"], p["b1"], p["w2"], p["b2"], p["ln_g"], p["ln_b"], ycol, yrow)
    return out, cl[0, 0]


# ---------------------------------------------------------------------------
# bidirectional LSTM, returning output[:, -1, :] = [h_fwd_final ; h_bwd at T-1]
# Input projection for all timesteps is precomputed in the wrapper; the kernel
# only runs the serial h @ W_hh recurrence.
# ---------------------------------------------------------------------------
def _bilstm_last_kernel(gxf_ref, whh_ref, gxb_ref, o_ref):
    T, B, _ = gxf_ref.shape
    H = whh_ref.shape[0]
    whh = whh_ref[...]                       # loaded once, resident in vregs/VMEM
    h0 = jnp.zeros((B, H), jnp.float32)
    c0 = jnp.zeros((B, H), jnp.float32)

    def gates_to_hc(gates, c):
        i = jax.nn.sigmoid(gates[:, 0 * H:1 * H])
        f = jax.nn.sigmoid(gates[:, 1 * H:2 * H])
        g = jnp.tanh(gates[:, 2 * H:3 * H])
        o = jax.nn.sigmoid(gates[:, 3 * H:4 * H])
        c_n = f * c + i * g
        return o * jnp.tanh(c_n), c_n

    def body(t, carry):
        h, c = carry
        gates = gxf_ref[t] + jnp.dot(h, whh, preferred_element_type=jnp.float32)
        return gates_to_hc(gates, c)

    h_fwd, _ = lax.fori_loop(0, T, body, (h0, c0))
    # Reverse direction's output at the last time index is its *first* step:
    # one cell on x[T-1] with zero initial state, so h0 @ W_hh_b vanishes and
    # only the precomputed input projection gxb is needed.
    h_bwd, _ = gates_to_hc(gxb_ref[...], c0)
    o_ref[:, 0:H] = h_fwd
    o_ref[:, H:2 * H] = h_bwd


def bilstm_last(x_btf, p):
    B, T, _ = x_btf.shape
    H = p["whh_f"].shape[0]
    # One fat matmul (M = T*B) that also produces the time-major layout and
    # folds the bias in, so the serial recurrence does only h @ W_hh per step.
    gx_f = jnp.einsum("bti,ih->tbh", x_btf, p["wih_f"],
                      preferred_element_type=jnp.float32) + p["b_f"]
    gx_b = jnp.dot(x_btf[:, -1, :], p["wih_b"],
                   preferred_element_type=jnp.float32) + p["b_b"]
    return pl.pallas_call(
        _bilstm_last_kernel,
        out_shape=jax.ShapeDtypeStruct((B, 2 * H), jnp.float32),
        in_specs=[VMEM_SPEC] * 3,
        out_specs=VMEM_SPEC,
        compiler_params=pltpu.CompilerParams(vmem_limit_bytes=64 * 1024 * 1024),
    )(gx_f, p["whh_f"], gx_b)


# ---------------------------------------------------------------------------
# fusion + classifier head + log_softmax, fused with get_clloss(T2, Z, y).
# The (4H, 768) classifier weight streams in two K-tiles (x1 part, Z part).
# ---------------------------------------------------------------------------
def _fusion_cl_kernel(x1_ref, o1_ref, o2_ref, fw1_ref, fb1_ref, fw2_ref, fb2_ref,
                      ycol_ref, yrow_ref, logp_ref, cl_ref, acc_ref, *, temp):
    j = pl.program_id(0)

    @pl.when(j == 0)
    def _():
        acc_ref[...] = jnp.zeros_like(acc_ref)

    # TODO(synk): F.softmax over the size-1 gate axis is identically 1.0, so the
    # gated fusion collapses exactly to Z = output_1 + output_2 (the w1/w2 gate
    # Linear layers cannot affect the output and are elided).
    # TODO(synk): the original `Z = torch.sum(Z, dim=1)` collapses Z to (B,) and makes
    # the following cat + Linear(768*4) shape-inconsistent; Z is kept as (B, 2H) here.
    z = o1_ref[...] + o2_ref[...]
    inp = jnp.where(j == 0, x1_ref[...], z)        # column block j of cat([x1, Z], 1)
    acc_ref[...] += jnp.dot(inp, fw1_ref[...], preferred_element_type=jnp.float32)

    @pl.when(j == pl.num_programs(0) - 1)
    def _():
        cl_ref[...] = _cl_loss_body(z, ycol_ref[...], yrow_ref[...], temp)
        # TODO(synk): nn.Dropout(0.5) layers in `fc` are identity in inference mode.
        h = jnp.maximum(acc_ref[...] + fb1_ref[...], 0.0)
        logits = jnp.dot(h, fw2_ref[...], preferred_element_type=jnp.float32) + fb2_ref[...]
        m = jnp.max(logits, axis=1, keepdims=True)
        lse = m + jnp.log(jnp.sum(jnp.exp(logits - m), axis=1, keepdims=True))
        logp_ref[...] = logits - lse


def fusion_head_with_cl(x1, o1, o2, labels, p, temp):
    B, D2 = o1.shape
    H = p["fc_w2"].shape[0]
    ycol = labels.reshape(B, 1).astype(jnp.float32)
    yrow = labels.reshape(1, B).astype(jnp.float32)
    const = lambda j: (0, 0)
    logp, cl = pl.pallas_call(
        functools.partial(_fusion_cl_kernel, temp=temp),
        out_shape=(jax.ShapeDtypeStruct((B, 2), jnp.float32),
                   jax.ShapeDtypeStruct((1, 1), jnp.float32)),
        grid_spec=pltpu.PrefetchScalarGridSpec(
            num_scalar_prefetch=0,
            grid=(2,),                                     # [x1-rows, Z-rows] of fc_w1
            in_specs=[
                pl.BlockSpec((B, D2), const),              # x1
                pl.BlockSpec((B, D2), const),              # lstm1 output
                pl.BlockSpec((B, D2), const),              # lstm2 output
                pl.BlockSpec((D2, H), lambda j: (j, 0)),   # fc_w1 K-tile (streamed)
                pl.BlockSpec((1, H), const),               # fc_b1
                pl.BlockSpec((H, 2), const),               # fc_w2
                pl.BlockSpec((1, 2), const),               # fc_b2
                pl.BlockSpec((B, 1), const),                # labels column
                pl.BlockSpec((1, B), const),                # labels row
            ],
            out_specs=(pl.BlockSpec((B, 2), const),
                       pl.BlockSpec((1, 1), const)),
            scratch_shapes=[pltpu.VMEM((B, H), jnp.float32)],
        ),
        compiler_params=pltpu.CompilerParams(dimension_semantics=("arbitrary",)),
    )(x1, o1, o2, p["fc_w1"], p["fc_b1"], p["fc_w2"], p["fc_b2"], ycol, yrow)
    return logp, cl[0, 0]


# ---------------------------------------------------------------------------
# parameter construction (deterministic, synthetic) and full forward
# ---------------------------------------------------------------------------
def init_params(key, H):
    D2 = 2 * H                                   # stands for opt.out_feats = 768*2
    ks = iter(jax.random.split(key, 32))

    def w(shape, scale=0.1):
        # All weights stay f32 so every dot is F32 x F32 -> F32.
        return scale * jax.random.normal(next(ks), shape, dtype=jnp.float32)

    def lstm(in_dim):
        return {"wih_f": w((in_dim, 4 * H)), "whh_f": w((H, 4 * H)),
                "b_f": w((1, 4 * H)),
                "wih_b": w((in_dim, 4 * H)), "whh_b": w((H, 4 * H)),
                "b_b": w((1, 4 * H))}

    return {
        "hard_fc1": {"w1": w((D2, D2)), "b1": w((1, D2)),
                     "w2": w((D2, D2)), "b2": w((1, D2)),
                     "ln_g": jnp.ones((1, D2), jnp.float32),
                     "ln_b": jnp.zeros((1, D2), jnp.float32)},
        "lstm1": lstm(H),      # nn.LSTM(768, 768, bidirectional) -> input dim H
        "lstm2": lstm(1),      # nn.LSTM(1, 768, bidirectional)   -> input dim 1
        "head": {
            # TODO(synk): the original w1/w2 gating Linear(768,1) layers feed a
            # softmax over a size-1 axis (identically 1.0); they cannot affect
            # the output, so no gate weights are materialized.
            "fc_w1": w((2 * D2, H)), "fc_b1": w((1, H)),
            "fc_w2": w((H, 2)), "fc_b2": w((1, 2)),
        },
    }


def mf_net_forward(text_feat, img_feat, labels, comm, sen, params, T1=0.7, T2=0.4):
    # TODO(synk): pretrained BERT CLS output and VGG19 pooled features are taken as
    # inputs (text_feat, img_feat); the backbones themselves are out of scope.
    x1_in = jnp.concatenate([text_feat, img_feat], axis=1)          # (B, 2H)
    x1, cl1 = hard_fc_with_cl(x1_in, labels, params["hard_fc1"], T1)  # hard_fc1 + cl1
    out1 = bilstm_last(comm, params["lstm1"])                       # lstm1 output[:, -1, :]
    out2 = bilstm_last(sen[:, :, None], params["lstm2"])            # lstm2 on sen.unsqueeze(2)
    logp, cl2 = fusion_head_with_cl(x1, out1, out2, labels, params["head"], T2)
    cl = cl1 + 0.1 * cl2
    return logp, cl, labels


if __name__ == "__main__":
    B, H, T_comm, T_sen = 4, 32, 8, 8          # small stand-ins for (8, 768, seq)
    key = jax.random.PRNGKey(0)
    k_text, k_img, k_comm, k_sen, k_par = jax.random.split(key, 5)
    text_feat = jax.random.normal(k_text, (B, H), dtype=jnp.float32)   # BERT CLS feat
    img_feat = jax.random.normal(k_img, (B, H), dtype=jnp.float32)     # VGG19 feat
    comm = jax.random.normal(k_comm, (B, T_comm, H), dtype=jnp.float32)
    sen = jax.random.normal(k_sen, (B, T_sen), dtype=jnp.float32)
    labels = jnp.array([0, 1, 0, 1], dtype=jnp.int32)

    params = init_params(k_par, H)
    logp, cl, y = mf_net_forward(text_feat, img_feat, labels, comm, sen, params)
    jax.block_until_ready((logp, cl))

    assert logp.shape == (B, 2) and cl.shape == ()
    assert bool(jnp.all(jnp.isfinite(logp))) and bool(jnp.isfinite(cl))
    print("KERNEL_OK")
</pallas_src>

<mosaic_0001>
module attributes {stable_mosaic.version = 11 : i64} {
  func.func @_hard_fc_cl_kernel(%arg0: i32, %arg1: memref<4x64xf32, #tpu.memory_space<vmem>>, %arg2: memref<64x64xf32, #tpu.memory_space<vmem>>, %arg3: memref<1x64xf32, #tpu.memory_space<vmem>>, %arg4: memref<64x64xf32, #tpu.memory_space<vmem>>, %arg5: memref<1x64xf32, #tpu.memory_space<vmem>>, %arg6: memref<1x64xf32, #tpu.memory_space<vmem>>, %arg7: memref<1x64xf32, #tpu.memory_space<vmem>>, %arg8: memref<4x1xf32, #tpu.memory_space<vmem>>, %arg9: memref<1x4xf32, #tpu.memory_space<vmem>>, %arg10: memref<4x64xf32, #tpu.memory_space<vmem>>, %arg11: memref<1x1xf32, #tpu.memory_space<vmem>>, %arg12: memref<4x64xf32, #tpu.memory_space<vmem>>) attributes {dimension_semantics = [#tpu.dimension_semantics<arbitrary>], iteration_bounds = array<i64: 1>, scalar_prefetch = 0 : i64, scratch_operands = 1 : i64, tpu.core_type = #tpu.core_type<tc>, window_params = [{pipeline_mode = #tpu.pipeline_mode<synchronous>, transform_indices = @transform_0, window_bounds = array<i64: 4, 64>}, {transform_indices = @transform_1, window_bounds = array<i64: 64, 64>}, {transform_indices = @transform_2, window_bounds = array<i64: 1, 64>}, {transform_indices = @transform_3, window_bounds = array<i64: 64, 64>}, {pipeline_mode = #tpu.pipeline_mode<synchronous>, transform_indices = @transform_4, window_bounds = array<i64: 1, 64>}, {pipeline_mode = #tpu.pipeline_mode<synchronous>, transform_indices = @transform_5, window_bounds = array<i64: 1, 64>}, {pipeline_mode = #tpu.pipeline_mode<synchronous>, transform_indices = @transform_6, window_bounds = array<i64: 1, 64>}, {pipeline_mode = #tpu.pipeline_mode<synchronous>, transform_indices = @transform_7, window_bounds = array<i64: 4, 1>}, {pipeline_mode = #tpu.pipeline_mode<synchronous>, transform_indices = @transform_8, window_bounds = array<i64: 1, 4>}, {pipeline_mode = #tpu.pipeline_mode<synchronous>, transform_indices = @transform_9, window_bounds = array<i64: 4, 64>}, {pipeline_mode = #tpu.pipeline_mode<synchronous>, transform_indices = @transform_10, window_bounds = array<i64: 1, 1>}]} {
    %c0_i32 = arith.constant 0 : i32
    %0 = arith.cmpi eq, %arg0, %c0_i32 : i32
    %1 = arith.extui %0 : i1 to i32
    %c0_i32_0 = arith.constant 0 : i32
    %2 = arith.cmpi ne, %1, %c0_i32_0 : i32
    scf.if %2 {
      %cst_16 = arith.constant 0.000000e+00 : f32
      %19 = vector.broadcast %cst_16 : f32 to vector<4x64xf32>
      %c0_17 = arith.constant 0 : index
      %c0_18 = arith.constant 0 : index
      %20 = vector.load %arg12[%c0_17, %c0_18] : memref<4x64xf32, #tpu.memory_space<vmem>>, vector<4x64xf32>
      tpu.vector_store %arg12[%c0_17, %c0_18], %19 {strides = array<i32>} : memref<4x64xf32, #tpu.memory_space<vmem>>, vector<4x64xf32>,
    } else {
    }
    %c0 = arith.constant 0 : index
    %c0_1 = arith.constant 0 : index
    %3 = vector.load %arg1[%c0, %c0_1] : memref<4x64xf32, #tpu.memory_space<vmem>>, vector<4x64xf32>
    %c0_2 = arith.constant 0 : index
    %c0_3 = arith.constant 0 : index
    %4 = vector.load %arg2[%c0_2, %c0_3] : memref<64x64xf32, #tpu.memory_space<vmem>>, vector<64x64xf32>
    %cst = arith.constant dense<0.000000e+00> : vector<4x64xf32>
    %5 = tpu.matmul %3, %4, %cst {dimension_numbers = #tpu.dot_dimension_numbers<[1], [0], [0], [1], [0, 0, 1, 1], [], []>} : vector<4x64xf32>, vector<64x64xf32>, vector<4x64xf32> -> vector<4x64xf32>
    %c0_4 = arith.constant 0 : index
    %c0_5 = arith.constant 0 : index
    %6 = vector.load %arg3[%c0_4, %c0_5] : memref<1x64xf32, #tpu.memory_space<vmem>>, vector<1x64xf32>
    %7 = vector.broadcast %6 : vector<1x64xf32> to vector<4x64xf32>
    %8 = arith.addf %5, %7 : vector<4x64xf32>
    %cst_6 = arith.constant 0.000000e+00 : f32
    %9 = vector.broadcast %cst_6 : f32 to vector<4x64xf32>
    %10 = arith.maximumf %8, %9 : vector<4x64xf32>
    %c0_7 = arith.constant 0 : index
    %c0_8 = arith.constant 0 : index
    %11 = vector.load %arg12[%c0_7, %c0_8] : memref<4x64xf32, #tpu.memory_space<vmem>>, vector<4x64xf32>
    %c0_9 = arith.constant 0 : index
    %c0_10 = arith.constant 0 : index
    %12 = vector.load %arg4[%c0_9, %c0_10] : memref<64x64xf32, #tpu.memory_space<vmem>>, vector<64x64xf32>
    %cst_11 = arith.constant dense<0.000000e+00> : vector<4x64xf32>
    %13 = tpu.matmul %10, %12, %cst_11 {dimension_numbers = #tpu.dot_dimension_numbers<[1], [0], [0], [1], [0, 0, 1, 1], [], []>} : vector<4x64xf32>, vector<64x64xf32>, vector<4x64xf32> -> vector<4x64xf32>
    %14 = arith.addf %11, %13 : vector<4x64xf32>
    %c0_12 = arith.constant 0 : index
    %c0_13 = arith.constant 0 : index
    %15 = vector.load %arg12[%c0_12, %c0_13] : memref<4x64xf32, #tpu.memory_space<vmem>>, vector<4x64xf32>
    tpu.vector_store %arg12[%c0_12, %c0_13], %14 {strides = array<i32>} : memref<4x64xf32, #tpu.memory_space<vmem>>, vector<4x64xf32>,
    %c0_i32_14 = arith.constant 0 : i32
    %16 = arith.cmpi eq, %arg0, %c0_i32_14 : i32
    %17 = arith.extui %16 : i1 to i32
    %c0_i32_15 = arith.constant 0 : i32
    %18 = arith.cmpi ne, %17, %c0_i32_15 : i32
    scf.if %18 {
      %c0_16 = arith.constant 0 : index
      %c0_17 = arith.constant 0 : index
      %19 = vector.load %arg12[%c0_16, %c0_17] : memref<4x64xf32, #tpu.memory_space<vmem>>, vector<4x64xf32>
      %c0_18 = arith.constant 0 : index
      %c0_19 = arith.constant 0 : index
      %20 = vector.load %arg5[%c0_18, %c0_19] : memref<1x64xf32, #tpu.memory_space<vmem>>, vector<1x64xf32>
      %21 = vector.broadcast %20 : vector<1x64xf32> to vector<4x64xf32>
      %22 = arith.addf %19, %21 : vector<4x64xf32>
      %c0_20 = arith.constant 0 : index
      %c0_21 = arith.constant 0 : index
      %23 = vector.load %arg1[%c0_20, %c0_21] : memref<4x64xf32, #tpu.memory_space<vmem>>, vector<4x64xf32>
      %24 = arith.addf %22, %23 : vector<4x64xf32>
      %cst_22 = arith.constant dense<0.000000e+00> : vector<4xf32>
      %25 = vector.multi_reduction <add>, %24, %cst_22 [1] : vector<4x64xf32> to vector<4xf32>
      %26 = vector.shape_cast %25 : vector<4xf32> to vector<4x1xf32>
      %cst_23 = arith.constant 6.400000e+01 : f32
      %27 = vector.broadcast %cst_23 : f32 to vector<4x1xf32>
      %28 = arith.divf %26, %27 : vector<4x1xf32>
      %29 = vector.broadcast %28 : vector<4x1xf32> to vector<4x64xf32>
      %30 = arith.subf %24, %29 : vector<4x64xf32>
      %31 = arith.mulf %30, %30 : vector<4x64xf32>
      %cst_24 = arith.constant dense<0.000000e+00> : vector<4xf32>
      %32 = vector.multi_reduction <add>, %31, %cst_24 [1] : vector<4x64xf32> to vector<4xf32>
      %33 = vector.shape_cast %32 : vector<4xf32> to vector<4x1xf32>
      %cst_25 = arith.constant 6.400000e+01 : f32
      %34 = vector.broadcast %cst_25 : f32 to vector<4x1xf32>
      %35 = arith.divf %33, %34 : vector<4x1xf32>
      %36 = vector.broadcast %28 : vector<4x1xf32> to vector<4x64xf32>
      %37 = arith.subf %24, %36 : vector<4x64xf32>
      %cst_26 = arith.constant 9.99999997E-7 : f32
      %38 = vector.broadcast %cst_26 : f32 to vector<4x1xf32>
      %39 = arith.addf %35, %38 : vector<4x1xf32>
      %40 = math.rsqrt %39 : vector<4x1xf32>
      %41 = vector.broadcast %40 : vector<4x1xf32> to vector<4x64xf32>
      %42 = arith.mulf %37, %41 : vector<4x64xf32>
      %c0_27 = arith.constant 0 : index
      %c0_28 = arith.constant 0 : index
      %43 = vector.load %arg6[%c0_27, %c0_28] : memref<1x64xf32, #tpu.memory_space<vmem>>, vector<1x64xf32>
      %44 = vector.broadcast %43 : vector<1x64xf32> to vector<4x64xf32>
      %45 = arith.mulf %42, %44 : vector<4x64xf32>
      %c0_29 = arith.constant 0 : index
      %c0_30 = arith.constant 0 : index
      %46 = vector.load %arg7[%c0_29, %c0_30] : memref<1x64xf32, #tpu.memory_space<vmem>>, vector<1x64xf32>
      %47 = vector.broadcast %46 : vector<1x64xf32> to vector<4x64xf32>
      %48 = arith.addf %45, %47 : vector<4x64xf32>
      %c0_31 = arith.constant 0 : index
      %c0_32 = arith.constant 0 : index
      %49 = vector.load %arg10[%c0_31, %c0_32] : memref<4x64xf32, #tpu.memory_space<vmem>>, vector<4x64xf32>
      tpu.vector_store %arg10[%c0_31, %c0_32], %48 {strides = array<i32>} : memref<4x64xf32, #tpu.memory_space<vmem>>, vector<4x64xf32>,
      %c0_33 = arith.constant 0 : index
      %c0_34 = arith.constant 0 : index
      %50 = vector.load %arg8[%c0_33, %c0_34] : memref<4x1xf32, #tpu.memory_space<vmem>>, vector<4x1xf32>
      %c0_35 = arith.constant 0 : index
      %c0_36 = arith.constant 0 : index
      %51 = vector.load %arg9[%c0_35, %c0_36] : memref<1x4xf32, #tpu.memory_space<vmem>>, vector<1x4xf32>
      %52 = arith.mulf %48, %48 : vector<4x64xf32>
      %cst_37 = arith.constant dense<0.000000e+00> : vector<4xf32>
      %53 = vector.multi_reduction <add>, %52, %cst_37 [1] : vector<4x64xf32> to vector<4xf32>
      %54 = vector.shape_cast %53 : vector<4xf32> to vector<4x1xf32>
      %cst_38 = arith.constant 1.000000e-16 : f32
      %55 = vector.broadcast %cst_38 : f32 to vector<4x1xf32>
      %56 = arith.maximumf %54, %55 : vector<4x1xf32>
      %57 = math.rsqrt %56 : vector<4x1xf32>
      %58 = vector.broadcast %57 : vector<4x1xf32> to vector<4x64xf32>
      %59 = arith.mulf %48, %58 : vector<4x64xf32>
      %cst_39 = arith.constant dense<0.000000e+00> : vector<4x4xf32>
      %60 = tpu.matmul %59, %59, %cst_39 {dimension_numbers = #tpu.dot_dimension_numbers<[1], [1], [0], [0], [0, 0, 1, 0], [], []>} : vector<4x64xf32>, vector<4x64xf32>, vector<4x4xf32> -> vector<4x4xf32>
      %61 = vector.broadcast %50 : vector<4x1xf32> to vector<4x4xf32>
      %62 = vector.broadcast %51 : vector<1x4xf32> to vector<4x4xf32>
      %63 = arith.cmpf oeq, %61, %62 : vector<4x4xf32>
      %64 = arith.extui %63 : vector<4x4xi1> to vector<4x4xi32>
      %65 = arith.sitofp %64 : vector<4x4xi32> to vector<4x4xf32>
      %66 = tpu.iota {dimensions = array<i32: 0>} : vector<4x4xi32>
      %67 = tpu.iota {dimensions = array<i32: 1>} : vector<4x4xi32>
      %68 = arith.cmpi eq, %66, %67 : vector<4x4xi32>
      %69 = arith.extui %68 : vector<4x4xi1> to vector<4x4xi32>
      %70 = arith.sitofp %69 : vector<4x4xi32> to vector<4x4xf32>
      %cst_40 = arith.constant 0.699999988 : f32
      %71 = vector.broadcast %cst_40 : f32 to vector<4x4xf32>
      %72 = arith.divf %60, %71 : vector<4x4xf32>
      %73 = math.exp %72 : vector<4x4xf32>
      %cst_41 = arith.constant 1.000000e+00 : f32
      %74 = vector.broadcast %cst_41 : f32 to vector<4x4xf32>
      %75 = arith.subf %74, %70 : vector<4x4xf32>
      %76 = arith.mulf %73, %75 : vector<4x4xf32>
      %77 = arith.mulf %65, %76 : vector<4x4xf32>
      %78 = arith.subf %76, %77 : vector<4x4xf32>
      %cst_42 = arith.constant dense<0.000000e+00> : vector<4xf32>
      %79 = vector.multi_reduction <add>, %78, %cst_42 [1] : vector<4x4xf32> to vector<4xf32>
      %80 = vector.shape_cast %79 : vector<4xf32> to vector<4x1xf32>
      %81 = vector.broadcast %80 : vector<4x1xf32> to vector<4x4xf32>
      %82 = arith.addf %77, %81 : vector<4x4xf32>
      %cst_43 = arith.constant 1.000000e+00 : f32
      %83 = vector.broadcast %cst_43 : f32 to vector<4x4xf32>
      %84 = arith.subf %83, %65 : vector<4x4xf32>
      %85 = arith.divf %77, %82 : vector<4x4xf32>
      %86 = arith.addf %84, %85 : vector<4x4xf32>
      %87 = arith.addf %86, %70 : vector<4x4xf32>
      %88 = math.log %87 : vector<4x4xf32>
      %cst_44 = arith.constant 0.000000e+00 : f32
      %89 = vector.broadcast %cst_44 : f32 to vector<4x4xf32>
      %90 = arith.subf %89, %88 : vector<4x4xf32>
      %cst_45 = arith.constant dense<0.000000e+00> : vector<4xf32>
      %91 = vector.multi_reduction <add>, %90, %cst_45 [1] : vector<4x4xf32> to vector<4xf32>
      %92 = vector.shape_cast %91 : vector<4xf32> to vector<4x1xf32>
      %cst_46 = arith.constant dense<0.000000e+00> : vector<1xf32>
      %93 = vector.multi_reduction <add>, %92, %cst_46 [0] : vector<4x1xf32> to vector<1xf32>
      %94 = vector.shape_cast %93 : vector<1xf32> to vector<1x1xf32>
      %cst_47 = arith.constant 8.000000e+00 : f32
      %95 = vector.broadcast %cst_47 : f32 to vector<1x1xf32>
      %96 = arith.divf %94, %95 : vector<1x1xf32>
      %97 = arith.cmpf one, %96, %96 : vector<1x1xf32>
      %cst_48 = arith.constant 0.000000e+00 : f32
      %98 = vector.broadcast %cst_48 : f32 to vector<1x1xf32>
      %99 = arith.select %97, %98, %96 : vector<1x1xi1>, vector<1x1xf32>
      %c0_49 = arith.constant 0 : index
      %c0_50 = arith.constant 0 : index
      %100 = vector.load %arg11[%c0_49, %c0_50] : memref<1x1xf32, #tpu.memory_space<vmem>>, vector<1x1xf32>
      tpu.vector_store %arg11[%c0_49, %c0_50], %99 {strides = array<i32>} : memref<1x1xf32, #tpu.memory_space<vmem>>, vector<1x1xf32>,
    } else {
    }
    return
  }
  func.func @transform_0(%arg0: i32) -> (i32, i32) {
    %c0_i32 = arith.constant 0 : i32
    %c0_i32_0 = arith.constant 0 : i32
    %c0_i32_1 = arith.constant 0 : i32
    return %c0_i32, %c0_i32_0 : i32, i32
  }
  func.func @transform_1(%arg0: i32) -> (i32, i32) {
    %c0_i32 = arith.constant 0 : i32
    %c0_i32_0 = arith.constant 0 : i32
    return %c0_i32, %arg0 : i32, i32
  }
  func.func @transform_2(%arg0: i32) -> (i32, i32) {
    %c0_i32 = arith.constant 0 : i32
    %c0_i32_0 = arith.constant 0 : i32
    return %c0_i32, %arg0 : i32, i32
  }
  func.func @transform_3(%arg0: i32) -> (i32, i32) {
    %c0_i32 = arith.constant 0 : i32
    %c0_i32_0 = arith.constant 0 : i32
    return %arg0, %c0_i32 : i32, i32
  }
  func.func @transform_4(%arg0: i32) -> (i32, i32) {
    %c0_i32 = arith.constant 0 : i32
    %c0_i32_0 = arith.constant 0 : i32
    %c0_i32_1 = arith.constant 0 : i32
    return %c0_i32, %c0_i32_0 : i32, i32
  }
  func.func @transform_5(%arg0: i32) -> (i32, i32) {
    %c0_i32 = arith.constant 0 : i32
    %c0_i32_0 = arith.constant 0 : i32
    %c0_i32_1 = arith.constant 0 : i32
    return %c0_i32, %c0_i32_0 : i32, i32
  }
  func.func @transform_6(%arg0: i32) -> (i32, i32) {
    %c0_i32 = arith.constant 0 : i32
    %c0_i32_0 = arith.constant 0 : i32
    %c0_i32_1 = arith.constant 0 : i32
    return %c0_i32, %c0_i32_0 : i32, i32
  }
  func.func @transform_7(%arg0: i32) -> (i32, i32) {
    %c0_i32 = arith.constant 0 : i32
    %c0_i32_0 = arith.constant 0 : i32
    %c0_i32_1 = arith.constant 0 : i32
    return %c0_i32, %c0_i32_0 : i32, i32
  }
  func.func @transform_8(%arg0: i32) -> (i32, i32) {
    %c0_i32 = arith.constant 0 : i32
    %c0_i32_0 = arith.constant 0 : i32
    %c0_i32_1 = arith.constant 0 : i32
    return %c0_i32, %c0_i32_0 : i32, i32
  }
  func.func @transform_9(%arg0: i32) -> (i32, i32) {
    %c0_i32 = arith.constant 0 : i32
    %c0_i32_0 = arith.constant 0 : i32
    %c0_i32_1 = arith.constant 0 : i32
    return %c0_i32, %c0_i32_0 : i32, i32
  }
  func.func @transform_10(%arg0: i32) -> (i32, i32) {
    %c0_i32 = arith.constant 0 : i32
    %c0_i32_0 = arith.constant 0 : i32
    %c0_i32_1 = arith.constant 0 : i32
    return %c0_i32, %c0_i32_0 : i32, i32
  }
}

</mosaic_0001>

<llo_original>
// kernel: tpu_custom_call.1
$region0: #{tpu_custom_call.1}
  #allocation0 [shape = 'u32[]', space=smem, size = 0x4, offset = 0x4, fixed_abs, tag = 'smem constant byte address 0x4 - core index']
  #allocation1 [shape = 'u32[72,128]{1,0:T(1,128)}', space=vmem, size = 0x9000, scoped, tag = 'internal scratch']
  #allocation2 [shape = 'f32[4,64]{1,0:T(4,128)}', space=vmem, size = 0x800, scoped, tag = 'scratch operand']
  %s0 = inlined_call_operand.vmem [shape: f32[4,64], index: 0, kind: input, shape index: {}]
  %s1 = inlined_call_operand.hbm [shape: f32[64,64], index: 1, kind: input, shape index: {}]
  %s2 = inlined_call_operand.vmem [shape: f32[1,64], index: 2, kind: input, shape index: {}]
  %s3 = inlined_call_operand.hbm [shape: f32[64,64], index: 3, kind: input, shape index: {}]
  %s4 = inlined_call_operand.vmem [shape: f32[1,64], index: 4, kind: input, shape index: {}]
  %s5 = inlined_call_operand.vmem [shape: f32[1,64], index: 5, kind: input, shape index: {}]
  %s6 = inlined_call_operand.vmem [shape: f32[1,64], index: 6, kind: input, shape index: {}]
  %s7 = inlined_call_operand.vmem [shape: f32[4,1], index: 7, kind: input, shape index: {}]
  %s8 = inlined_call_operand.vmem [shape: f32[1,4], index: 8, kind: input, shape index: {}]
  %s9 = inlined_call_operand.hbm [shape: f32[4,64], index: 9, kind: output, shape index: {0}]
  %s10 = inlined_call_operand.hbm [shape: f32[1,1], index: 10, kind: output, shape index: {1}]
  %11 = xla_tuple %s9, %s10
  %s12 = sld [smem:[#allocation0]]
  $region70: #{tpu_custom_call.1} parent=0
    _
  %s14 = ssub.s32 1, %s12
  %s15 = scalar_select 0, %s14, %s12
  $region1: #{tpu_custom_call.1} parent=0
    #allocation3 [shape = 'u8[32768]{0}', space=vmem, size = 0x8000, scoped, tag = 'input window, operand 1, single buffered']
    #allocation4 [shape = 's32[1]{0}', space=sflag, size = 0x4, scoped, tag = 'scoped memory for tpu_custom_call.1']
    #allocation5 [shape = 's32[1]{0}', space=sflag, size = 0x4, scoped, tag = 'scoped memory for tpu_custom_call.1']
    #allocation6 [shape = 'u8[32768]{0}', space=vmem, size = 0x8000, scoped, tag = 'input window, operand 3, single buffered']
    #allocation7 [shape = 's32[1]{0}', space=sflag, size = 0x4, scoped, tag = 'scoped memory for tpu_custom_call.1']
    #allocation8 [shape = 'u8[2048]{0}', space=vmem, size = 0x800, scoped, tag = 'output window, operand 0, single buffered']
    #allocation9 [shape = 'u8[512]{0}', space=vmem, size = 0x400, scoped, tag = 'output window, operand 1, single buffered']
    #allocation10 [shape = 's32[1]{0}', space=sflag, size = 0x4, scoped, tag = 'scoped memory for tpu_custom_call.1']
    %16 = vsyncpa [#allocation4], 0
    %17 = vsyncpa [#allocation7], 0
    %18 = vsyncpa [#allocation5], 0
    %19 = vsyncpa [#allocation10], 0
    // Predicated region
    $region2: #{tpu_custom_call.1} parent=1 // pred_check
      _
    $region3: #{tpu_custom_call.1} parent=1 // pred_check_branch
      %21 = sbr.rel (0) target = $region5
    $region4: #{tpu_custom_call.1} parent=1 // pred_region
      _
    $region5: #{tpu_custom_call.1} parent=1 // pred_fallthru
      _
    // Predicated region
    $region6: #{tpu_custom_call.1} parent=1 // pred_check
      _
    $region7: #{tpu_custom_call.1} parent=1 // pred_check_branch
      %23 = sbr.rel (0) target = $region9
    $region8: #{tpu_custom_call.1} parent=1 // pred_region
      %25 = vsyncadd [#allocation4], 0
      %s26 = sshll.u32 %s1, 4
      %s27 = int_to_ptr.hbm [resolvable:$true] %s26
      %s28 = sshll.u32 [#allocation3], 4
      %s29 = int_to_ptr.vmem [resolvable:$true] %s28
      %34 = dma.hbm_to_vmem [thread:$0]  %s27, 1024, %s29, [#allocation4], 128, 128, 8
    $region9: #{tpu_custom_call.1} parent=1 // pred_fallthru
      _
    // Predicated region
    $region10: #{tpu_custom_call.1} parent=1 // pred_check
      _
    $region11: #{tpu_custom_call.1} parent=1 // pred_check_branch
      %36 = sbr.rel (0) target = $region13
    $region12: #{tpu_custom_call.1} parent=1 // pred_region
      _
    $region13: #{tpu_custom_call.1} parent=1 // pred_fallthru
      _
    // Predicated region
    $region14: #{tpu_custom_call.1} parent=1 // pred_check
      _
    $region15: #{tpu_custom_call.1} parent=1 // pred_check_branch
      %38 = sbr.rel (0) target = $region17
    $region16: #{tpu_custom_call.1} parent=1 // pred_region
      %40 = vsyncadd [#allocation7], 0
      %s41 = sshll.u32 %s3, 4
      %s42 = int_to_ptr.hbm [resolvable:$true] %s41
      %s43 = sshll.u32 [#allocation6], 4
      %s44 = int_to_ptr.vmem [resolvable:$true] %s43
      %49 = dma.hbm_to_vmem [thread:$0]  %s42, 1024, %s44, [#allocation7], 128, 128, 8
    $region17: #{tpu_custom_call.1} parent=1 // pred_fallthru
      _
    // Predicated region
    $region18: #{tpu_custom_call.1} parent=1 // pred_check
      _
    $region19: #{tpu_custom_call.1} parent=1 // pred_check_branch
      %51 = sbr.rel (0) target = $region21
    $region20: #{tpu_custom_call.1} parent=1 // pred_region
      _
    $region21: #{tpu_custom_call.1} parent=1 // pred_fallthru
      _
    // Predicated region
    $region22: #{tpu_custom_call.1} parent=1 // pred_check
      _
    $region23: #{tpu_custom_call.1} parent=1 // pred_check_branch
      %53 = sbr.rel (0) target = $region25
    $region24: #{tpu_custom_call.1} parent=1 // pred_region
      _
    $region25: #{tpu_custom_call.1} parent=1 // pred_fallthru
      _
    // Predicated region
    $region26: #{tpu_custom_call.1} parent=1 // pred_check
      _
    $region27: #{tpu_custom_call.1} parent=1 // pred_check_branch
      %55 = sbr.rel (0) target = $region29
    $region28: #{tpu_custom_call.1} parent=1 // pred_region
      _
    $region29: #{tpu_custom_call.1} parent=1 // pred_fallthru
      _
    // Predicated region
    $region30: #{tpu_custom_call.1} parent=1 // pred_check
      _
    $region31: #{tpu_custom_call.1} parent=1 // pred_check_branch
      %57 = sbr.rel (0) target = $region33
    $region32: #{tpu_custom_call.1} parent=1 // pred_region
      _
    $region33: #{tpu_custom_call.1} parent=1 // pred_fallthru
      _
    // Predicated region
    $region34: #{tpu_custom_call.1} parent=1 // pred_check
      _
    $region35: #{tpu_custom_call.1} parent=1 // pred_check_branch
      %59 = sbr.rel (0) target = $region37
    $region36: #{tpu_custom_call.1} parent=1 // pred_region
      _
    $region37: #{tpu_custom_call.1} parent=1 // pred_fallthru
      _
    // Predicated region
    $region38: #{tpu_custom_call.1} parent=1 // pred_check
      _
    $region39: #{tpu_custom_call.1} parent=1 // pred_check_branch
      %61 = sbr.rel (0) target = $region41
    $region40: #{tpu_custom_call.1} parent=1 // pred_region
      %63 = dma.done [#allocation4], 1024
    $region41: #{tpu_custom_call.1} parent=1 // pred_fallthru
      _
    // Predicated region
    $region42: #{tpu_custom_call.1} parent=1 // pred_check
      _
    $region43: #{tpu_custom_call.1} parent=1 // pred_check_branch
      %65 = sbr.rel (0) target = $region45
    $region44: #{tpu_custom_call.1} parent=1 // pred_region
      %67 = dma.done [#allocation7], 1024
    $region45: #{tpu_custom_call.1} parent=1 // pred_fallthru
      _
    %p68 = scmp.eq.s32.totalorder 0, 0
    // Predicated region
    $region46: #{tpu_custom_call.1} parent=1 // pred_check
      %p69 = pneg %p68
    $region47: #{tpu_custom_call.1} parent=1 // pred_check_branch
      %71 = sbr.rel (%p69) target = $region49
    $region48: #{tpu_custom_call.1} parent=1 // pred_region
      %vm72 = vcmask 519168
      %73 = vst.msk [vmem:[#allocation2] sm:$0xf] %vm72, 0.0
    $region49: #{tpu_custom_call.1} parent=1 // pred_fallthru
      _
    %v74 = vld [vmem:[%s0] sm:$0xf]
    %v75 = vld [vmem:[#allocation3] sm:$0xff]
    %v76 = vld [vmem:[#allocation3 + $0x8] sm:$0xff]
    %v77 = vld [vmem:[#allocation3 + $0x10] sm:$0xff]
    %v78 = vld [vmem:[#allocation3 + $0x18] sm:$0xff]
    %v79 = vld [vmem:[#allocation3 + $0x20] sm:$0xff]
    %v80 = vld [vmem:[#allocation3 + $0x28] sm:$0xff]
    %v81 = vld [vmem:[#allocation3 + $0x30] sm:$0xff]
    %v82 = vld [vmem:[#allocation3 + $0x38] sm:$0xff]
    %v83 = vld [vmem:[%s2] sm:$0x1]
    %v85 = vperm.slane %v83, 0
    %vm87 = vcmask 523264
    %v89 = vsel %vm87, %v74, 0
    %91 = vmatpush.msra.mxu0 0.0
    %92 = vmatpush.msra.mxu0 0.0
    %93 = vmatpush.msra.mxu0 0.0
    %94 = vmatpush.msra.mxu0 0.0
    %95 = vmatpush.msra.mxu0 0.0
    %96 = vmatpush.msra.mxu0 0.0
    %97 = vmatpush.msra.mxu0 0.0
    %98 = vmatpush.msra.mxu0 0.0
    %99 = vmatpush.msra.mxu0 %v82
    %100 = vmatpush.msra.mxu0 %v81
    %101 = vmatpush.msra.mxu0 %v80
    %102 = vmatpush.msra.mxu0 %v79
    %103 = vmatpush.msra.mxu0 %v78
    %104 = vmatpush.msra.mxu0 %v77
    %105 = vmatpush.msra.mxu0 %v76
    %106 = vmatpush.msra.mxu0 %v75
    %107 = vmatmul.f32.gmra.mxu0 %v89
    %v108 = vpop.f32.mrf.mxu0
    %v109 = vadd.f32 %v85, %v108
    %110 = vdwg.mxu0
    %v111 = vmax.f32 %v109, 0.0
    %v112 = vld [vmem:[#allocation2] sm:$0xf]
    %v113 = vld [vmem:[#allocation6] sm:$0xff]
    %v114 = vld [vmem:[#allocation6 + $0x8] sm:$0xff]
    %v115 = vld [vmem:[#allocation6 + $0x10] sm:$0xff]
    %v116 = vld [vmem:[#allocation6 + $0x18] sm:$0xff]
    %v117 = vld [vmem:[#allocation6 + $0x20] sm:$0xff]
    %v118 = vld [vmem:[#allocation6 + $0x28] sm:$0xff]
    %v119 = vld [vmem:[#allocation6 + $0x30] sm:$0xff]
    %v120 = vld [vmem:[#allocation6 + $0x38] sm:$0xff]
    %v122 = vsel %vm87, %v111, 0
    %124 = vmatpush.msra.mxu0 0.0
    %125 = vmatpush.msra.mxu0 0.0
    %126 = vmatpush.msra.mxu0 0.0
    %127 = vmatpush.msra.mxu0 0.0
    %128 = vmatpush.msra.mxu0 0.0
    %129 = vmatpush.msra.mxu0 0.0
    %130 = vmatpush.msra.mxu0 0.0
    %131 = vmatpush.msra.mxu0 0.0
    %132 = vmatpush.msra.mxu0 %v120
    %133 = vmatpush.msra.mxu0 %v119
    %134 = vmatpush.msra.mxu0 %v118
    %135 = vmatpush.msra.mxu0 %v117
    %136 = vmatpush.msra.mxu0 %v116
    %137 = vmatpush.msra.mxu0 %v115
    %138 = vmatpush.msra.mxu0 %v114
    %139 = vmatpush.msra.mxu0 %v113
    %140 = vmatmul.f32.gmra.mxu0 %v122
    %v141 = vpop.f32.mrf.mxu0
    %v142 = vadd.f32 0.0, %v141
    %143 = vdwg.mxu0
    %v144 = vadd.f32 %v112, %v142
    %vm145 = vcmask 519168
    %146 = vst.msk [vmem:[#allocation2] sm:$0xf] %vm145, %v144
    // Predicated region
    $region50: #{tpu_custom_call.1} parent=1 // pred_check
      %p147 = pneg %p68
    $region51: #{tpu_custom_call.1} parent=1 // pred_check_branch
      %149 = sbr.rel (%p147) target = $region53
    $region52: #{tpu_custom_call.1} parent=1 // pred_region
      %v150 = vld [vmem:[#allocation2] sm:$0xf]
      %v151 = vld [vmem:[%s4] sm:$0x1]
      %v153 = vperm.slane %v151, 0
      %v155 = vadd.f32 %v150, %v153
      %v156 = vld [vmem:[%s0] sm:$0xf]
      %v157 = vadd.f32 %v155, %v156
      %v158 = vsel %vm145, %v157, 0.0
      %159 = vadd.xlane.f32.xlu0 %v158
      %v160 = vpop.xlane.xlu0 %159
      %v161 = vrcp.pop 64.0
      %v162 = vmul.f32 64.0, %v161
      %v163 = vsub.f32 1.0, %v162
      %v164 = vmul.f32 %v161, %v163
      %v165 = vadd.f32 %v161, %v164
      %vm166 = vweird.f32 %v161
      %v167 = vsel %vm166, %v161, %v165
      %v168 = vmul.f32 %v160, %v167
      %v169 = vsub.f32 %v157, %v168
      %v170 = vmul.f32 %v169, %v169
      %v171 = vsel %vm145, %v170, 0.0
      %172 = vadd.xlane.f32.xlu0 %v171
      %v173 = vpop.xlane.xlu0 %172
      %v174 = vmul.f32 %v173, %v167
      %v175 = vadd.f32 %v174, 1e-06
      %v176 = vrsqrt.pop %v175
      %v177 = vmul.f32 %v176, %v175
      %v178 = vmul.f32 %v177, %v176
      %v179 = vmul.f32 0.5, %v178
      %v180 = vsub.f32 1.5, %v179
      %v181 = vmul.f32 %v176, %v180
      %vm182 = vweird.f32 %v175
      %vm183 = vweird.f32 %v176
      %vm184 = vmor %vm182, %vm183
      %v185 = vsel %vm184, %v176, %v181
      %v186 = vmul.f32 %v169, %v185
      %v187 = vld [vmem:[%s5] sm:$0x1]
      %v189 = vperm.slane %v187, 0
      %v191 = vmul.f32 %v186, %v189
      %v192 = vld [vmem:[%s6] sm:$0x1]
      %v194 = vperm.slane %v192, 0
      %v196 = vadd.f32 %v191, %v194
      %197 = vst.msk [vmem:[#allocation8] sm:$0xf] %vm145, %v196
      %v198 = vld [vmem:[%s7] sm:$0xf]
      %v199 = vld [vmem:[%s8] sm:$0x1]
      %v200 = vmul.f32 %v196, %v196
      %v201 = vsel %vm145, %v200, 0.0
      %202 = vadd.xlane.f32.xlu0 %v201
      %v203 = vpop.xlane.xlu0 %202
      %v204 = vmax.f32 %v203, 1e-16
      %v205 = vrsqrt.pop %v204
      %v206 = vmul.f32 %v205, %v204
      %v207 = vmul.f32 %v206, %v205
      %v208 = vmul.f32 0.5, %v207
      %v209 = vsub.f32 1.5, %v208
      %v210 = vmul.f32 %v205, %v209
      %vm211 = vweird.f32 %v204
      %vm212 = vweird.f32 %v205
      %vm213 = vmor %vm211, %vm212
      %v214 = vsel %vm213, %v205, %v210
      %v215 = vmul.f32 %v196, %v214
      %v217 = vsel %vm87, %v215, 0
      %219 = vmatpush.xpose.msra.mxu0 0.0
      %220 = vmatpush.xpose.msra.mxu0 0.0
      %221 = vmatpush.xpose.msra.mxu0 0.0
      %222 = vmatpush.xpose.msra.mxu0 0.0
      %223 = vmatpush.xpose.msra.mxu0 0.0
      %224 = vmatpush.xpose.msra.mxu0 0.0
      %225 = vmatpush.xpose.msra.mxu0 0.0
      %226 = vmatpush.xpose.msra.mxu0 0.0
      %227 = vmatpush.xpose.msra.mxu0 0.0
      %228 = vmatpush.xpose.msra.mxu0 0.0
      %229 = vmatpush.xpose.msra.mxu0 0.0
      %230 = vmatpush.xpose.msra.mxu0 0.0
      %231 = vmatpush.xpose.msra.mxu0 0.0
      %232 = vmatpush.xpose.msra.mxu0 0.0
      %233 = vmatpush.xpose.msra.mxu0 0.0
      %234 = vmatpush.xpose.msra.mxu0 %v217
      %235 = vmatmul.f32.gmra.mxu0 %v217
      %v236 = vpop.f32.mrf.mxu0
      %v237 = vadd.f32 0.0, %v236
      %238 = vdwg.mxu0
      %240 = vset.pattern.permute.xlu0 0
      %241 = vperm.xlu0 %240, %v198
      %v242 = vpop.permute.xlu0 %241
      %v245 = vperm.slane %v199, 0
      %vm247 = vcmp.eq.f32.partialorder %v242, %v245
      %v248 = vsel %vm247, 1, 0
      %v249 = vcvt.s32.f32 %v248
      %v250 = vlaneseq
      %v251 = vshrl.u32 %v250, 7
      %v252 = vlaneseq
      %v253 = vand.u32 %v252, 127
      %vm254 = vcmp.eq.s32.totalorder %v251, %v253
      %v255 = vsel %vm254, 1, 0
      %v256 = vcvt.s32.f32 %v255
      %v257 = vrcp.pop 0.7
      %v258 = vmul.f32 0.7, %v257
      %v259 = vsub.f32 1.0, %v258
      %v260 = vmul.f32 %v257, %v259
      %v261 = vadd.f32 %v257, %v260
      %vm262 = vweird.f32 %v257
      %v263 = vsel %vm262, %v257, %v261
      %v264 = vmul.f32 %v237, %v263
      %v265 = vmul.f32 %v264, 1.442695
      %v266 = vpow.pop %v265
      %v267 = vsub.f32 1.0, %v256
      %v268 = vmul.f32 %v266, %v267
      %v269 = vmul.f32 %v249, %v268
      %v270 = vsub.f32 %v268, %v269
      %vm271 = vcmask 27648
      %v272 = vsel %vm271, %v270, 0.0
      %273 = vadd.xlane.f32.xlu0 %v272
      %v274 = vpop.xlane.xlu0 %273
      %v275 = vadd.f32 %v269, %v274
      %v276 = vsub.f32 1.0, %v249
      %v277 = vrcp.pop %v275
      %v278 = vmul.f32 %v275, %v277
      %v279 = vsub.f32 1.0, %v278
      %v280 = vmul.f32 %v277, %v279
      %v281 = vadd.f32 %v277, %v280
      %vm282 = vweird.f32 %v275
      %vm283 = vweird.f32 %v277
      %vm284 = vmor %vm282, %vm283
      %v285 = vsel %vm284, %v277, %v281
      %v286 = vand.u32 2147483647, %v275
      %vm287 = vcmp.eq.f32.partialorder %v286, 8.507059e+37
      %v288 = vand.u32 %v275, 2147483648
      %v289 = vor.u32 1.1754944e-38, %v288
      %v290 = vsel %vm287, %v289, %v285
      %v291 = vmul.f32 %v269, %v290
      %v292 = vadd.f32 %v276, %v291
      %v293 = vadd.f32 %v292, %v256
      %v294 = vlog2.pop %v293
      %v295 = vmul.f32 %v294, 0.6931472
      %v296 = vsub.f32 0.0, %v295
      %v297 = vsel %vm271, %v296, 0.0
      %298 = vadd.xlane.f32.xlu0 %v297
      %v299 = vpop.xlane.xlu0 %298
      %vm300 = vcmask 1043456
      %v301 = vsel %vm300, %v299, 0.0
      %v302 = vrot.slane %v301, 4
      %v303 = vadd.f32 %v301, %v302
      %v304 = vrot.slane %v303, 2
      %v305 = vadd.f32 %v303, %v304
      %v306 = vrot.slane %v305, 1
      %v307 = vadd.f32 %v305, %v306
      %v308 = vrcp.pop 8.0
      %v309 = vmul.f32 8.0, %v308
      %v310 = vsub.f32 1.0, %v309
      %v311 = vmul.f32 %v308, %v310
      %v312 = vadd.f32 %v308, %v311
      %vm313 = vweird.f32 %v308
      %v314 = vsel %vm313, %v308, %v312
      %v315 = vmul.f32 %v307, %v314
      %vm316 = vcmp.ne.f32.partialorder %v315, %v315
      %v317 = vsel %vm316, 0.0, %v315
      %vm318 = vcmask 0
      %319 = vst.msk [vmem:[#allocation9] sm:$0x1] %vm318, %v317
    $region53: #{tpu_custom_call.1} parent=1 // pred_fallthru
      _
    // Predicated region
    $region54: #{tpu_custom_call.1} parent=1 // pred_check
      _
    $region55: #{tpu_custom_call.1} parent=1 // pred_check_branch
      %321 = sbr.rel (0) target = $region57
    $region56: #{tpu_custom_call.1} parent=1 // pred_region
      %323 = vsyncadd [#allocation5], 0
      %s325 = sshll.u32 [#allocation8], 4
      %s326 = int_to_ptr.vmem [resolvable:$true] %s325
      %s327 = sshll.u32 %s9, 4
      %s328 = int_to_ptr.hbm [resolvable:$true] %s327
      %330 = dma.vmem_to_hbm [thread:$0]  %s326, 64, %s328, [#allocation5]
    $region57: #{tpu_custom_call.1} parent=1 // pred_fallthru
      _
    // Predicated region
    $region58: #{tpu_custom_call.1} parent=1 // pred_check
      _
    $region59: #{tpu_custom_call.1} parent=1 // pred_check_branch
      %332 = sbr.rel (0) target = $region61
    $region60: #{tpu_custom_call.1} parent=1 // pred_region
      %334 = vsyncadd [#allocation10], 0
      %s336 = sshll.u32 [#allocation9], 4
      %s337 = int_to_ptr.vmem [resolvable:$true] %s336
      %s338 = sshll.u32 %s10, 4
      %s339 = int_to_ptr.hbm [resolvable:$true] %s338
      %341 = dma.vmem_to_hbm [thread:$0]  %s337, 16, %s339, [#allocation10]
    $region61: #{tpu_custom_call.1} parent=1 // pred_fallthru
      _
    // Predicated region
    $region62: #{tpu_custom_call.1} parent=1 // pred_check
      _
    $region63: #{tpu_custom_call.1} parent=1 // pred_check_branch
      %343 = sbr.rel (0) target = $region65
    $region64: #{tpu_custom_call.1} parent=1 // pred_region
      %345 = dma.done [#allocation5], 64
    $region65: #{tpu_custom_call.1} parent=1 // pred_fallthru
      _
    // Predicated region
    $region66: #{tpu_custom_call.1} parent=1 // pred_check
      _
    $region67: #{tpu_custom_call.1} parent=1 // pred_check_branch
      %347 = sbr.rel (0) target = $region69
    $region68: #{tpu_custom_call.1} parent=1 // pred_region
      %349 = dma.done [#allocation10], 16
    $region69: #{tpu_custom_call.1} parent=1 // pred_fallthru
      _
    %350 = vsyncpa [#allocation4], 1
    %351 = vsyncpa [#allocation7], 1
    %352 = vsyncpa [#allocation5], 1
    %353 = vsyncpa [#allocation10], 1

</llo_original>
